<compile_context>
chip_gen: v7x
topology: tpu7x:2x2x1
jax: 0.10.0
libtpu: 0.0.40
codegen_flags: <defaults>
</compile_context>

<pallas_src>
import jax
import jax.numpy as jnp
from jax.experimental import pallas as pl
from jax.experimental.pallas import tpu as pltpu

_LANE = 128
# ~8 MiB per block: DMA time per block >> 0.35 us step overhead on every
# generation (incl. v7x at ~3.2 TB/s HBM), pushing the streamer to >90% of
# the HBM roofline.  Double-buffered in + out blocks = ~32 MiB of VMEM.
_TARGET_BLOCK_BYTES = 8 * 2**20
# Scoped-VMEM limit: 48 MiB fits v7x's 64 MiB physical VMEM with headroom and
# is far under the 128 MiB physical VMEM of v5e/v6e.
_VMEM_LIMIT_BYTES = 48 * 2**20
# Below this size the fixed kernel-launch / single-step overhead dominates and
# XLA's fused elementwise relu is at least as fast.
_MIN_PALLAS_BYTES = 256 * 1024


def _relu_kernel(x_ref, o_ref):
    # relu(relu(x)) == relu(x): single VPU max against scalar 0.
    o_ref[...] = jnp.maximum(x_ref[...], 0)


def _relu_slab(slab: jax.Array) -> jax.Array:
    """Run the relu kernel over a lane-dense (rows, 128) slab."""
    rows, _ = slab.shape
    itemsize = jnp.dtype(slab.dtype).itemsize
    # Packed sublane count: f32 -> 8, bf16 -> 16, int8/fp8 -> 32.
    sublane = 8 * max(1, 4 // itemsize)

    # Byte-targeted block rows, rounded down to the packed-sublane multiple.
    target_rows = max(
        sublane, (_TARGET_BLOCK_BYTES // (_LANE * itemsize)) // sublane * sublane
    )
    if rows <= target_rows:
        block_rows = rows  # full-dim block is always a legal block shape
    else:
        steps = pl.cdiv(rows, target_rows)
        if steps < 4:
            # Keep >=4 reasonably even grid steps so v7x's two TensorCores
            # share the "parallel" axis without one core idling.
            block_rows = max(sublane, pl.cdiv(pl.cdiv(rows, 4), sublane) * sublane)
        else:
            block_rows = target_rows

    grid = (pl.cdiv(rows, block_rows),)

    return pl.pallas_call(
        _relu_kernel,
        out_shape=jax.ShapeDtypeStruct((rows, _LANE), slab.dtype),
        grid=grid,
        in_specs=[pl.BlockSpec((block_rows, _LANE), lambda i: (i, 0))],
        out_specs=pl.BlockSpec((block_rows, _LANE), lambda i: (i, 0)),
        compiler_params=pltpu.CompilerParams(
            dimension_semantics=("parallel",),
            vmem_limit_bytes=_VMEM_LIMIT_BYTES,
        ),
    )(slab)


def simple_relu_model(x: jax.Array, *, use_pallas=None) -> jax.Array:
    """relu(relu(x)) for an arbitrary-shaped array (e.g. NCHW).

    use_pallas: None = auto (skip the kernel for tiny inputs where launch
    overhead dominates); True/False forces the choice.
    """
    n_elems = x.size
    n_bytes = n_elems * jnp.dtype(x.dtype).itemsize
    if use_pallas is None:
        use_pallas = n_bytes >= _MIN_PALLAS_BYTES
    if not use_pallas or n_elems == 0:
        return jnp.maximum(x, 0)

    orig_shape = x.shape
    flat = jnp.ravel(x)
    n_aligned = (n_elems // _LANE) * _LANE
    if n_aligned == 0:
        # Fewer than 128 elements: not worth a kernel at all.
        return jnp.maximum(x, 0)

    if n_aligned == n_elems:
        # Common aligned case: pure reshape in, reshape out -- no pad/slice copies.
        slab = flat.reshape(n_elems // _LANE, _LANE)
        return _relu_slab(slab).reshape(orig_shape)

    # Unaligned: Pallas on the 128-aligned prefix, plain VPU max on the <128
    # element tail, stitched back together.  Avoids the full-array jnp.pad and
    # trailing slice copies of a padded-slab approach.
    prefix = _relu_slab(flat[:n_aligned].reshape(n_aligned // _LANE, _LANE))
    tail = jnp.maximum(flat[n_aligned:], 0)
    return jnp.concatenate([prefix.reshape(-1), tail]).reshape(orig_shape)


if __name__ == "__main__":
    key = jax.random.PRNGKey(0)
    k1, k2 = jax.random.split(key)

    # NCHW input consistent with the test: batch=2, channels=4, 16x16 spatial.
    x = jax.random.normal(k1, (2, 4, 16, 16), dtype=jnp.float32)

    # Force the Pallas path (the auto heuristic would skip it for this tiny
    # tensor) so the kernel itself is compiled and executed.
    out = jax.block_until_ready(simple_relu_model(x, use_pallas=True))
    ref = jnp.maximum(jnp.maximum(x, 0.0), 0.0)
    assert out.shape == x.shape and out.dtype == x.dtype
    assert jnp.array_equal(out, ref), "mismatch vs reference (aligned path)"

    # Element count not a multiple of 128 (2*3*5*7 = 210): exercises the
    # aligned-prefix kernel + tail stitching path.
    y = jax.random.normal(k2, (2, 3, 5, 7), dtype=jnp.float32)
    out_y = jax.block_until_ready(simple_relu_model(y, use_pallas=True))
    ref_y = jnp.maximum(jnp.maximum(y, 0.0), 0.0)
    assert out_y.shape == y.shape and out_y.dtype == y.dtype
    assert jnp.array_equal(out_y, ref_y), "mismatch vs reference (unaligned path)"

    # Auto path: tiny input falls back to XLA's fused relu.
    out_auto = jax.block_until_ready(simple_relu_model(x))
    assert jnp.array_equal(out_auto, ref), "mismatch vs reference (fallback path)"

    print("KERNEL_OK")
</pallas_src>

<mosaic_0001>
module attributes {stable_mosaic.version = 11 : i64} {
  func.func @_relu_kernel(%arg0: i32, %arg1: memref<16x128xf32, #tpu.memory_space<vmem>>, %arg2: memref<16x128xf32, #tpu.memory_space<vmem>>) attributes {dimension_semantics = [#tpu.dimension_semantics<parallel>], iteration_bounds = array<i64: 1>, scalar_prefetch = 0 : i64, scratch_operands = 0 : i64, tpu.core_type = #tpu.core_type<tc>, window_params = [{transform_indices = @transform_0, window_bounds = array<i64: 16, 128>}, {transform_indices = @transform_1, window_bounds = array<i64: 16, 128>}]} {
    %c0 = arith.constant 0 : index
    %c0_0 = arith.constant 0 : index
    %0 = vector.load %arg1[%c0, %c0_0] : memref<16x128xf32, #tpu.memory_space<vmem>>, vector<16x128xf32>
    %cst = arith.constant 0.000000e+00 : f32
    %1 = vector.broadcast %cst : f32 to vector<16x128xf32>
    %2 = arith.maximumf %0, %1 : vector<16x128xf32>
    %c0_1 = arith.constant 0 : index
    %c0_2 = arith.constant 0 : index
    %3 = vector.load %arg2[%c0_1, %c0_2] : memref<16x128xf32, #tpu.memory_space<vmem>>, vector<16x128xf32>
    tpu.vector_store %arg2[%c0_1, %c0_2], %2 {strides = array<i32>} : memref<16x128xf32, #tpu.memory_space<vmem>>, vector<16x128xf32>,
    return
  }
  func.func @transform_0(%arg0: i32) -> (i32, i32) {
    %c0_i32 = arith.constant 0 : i32
    %c0_i32_0 = arith.constant 0 : i32
    return %arg0, %c0_i32 : i32, i32
  }
  func.func @transform_1(%arg0: i32) -> (i32, i32) {
    %c0_i32 = arith.constant 0 : i32
    %c0_i32_0 = arith.constant 0 : i32
    return %arg0, %c0_i32 : i32, i32
  }
}

</mosaic_0001>

<llo_original>
// kernel: tpu_custom_call.1
$region0: #{tpu_custom_call.1}
  #allocation0 [shape = 'u32[]', space=smem, size = 0x4, offset = 0x4, fixed_abs, tag = 'smem constant byte address 0x4 - core index']
  #allocation1 [shape = 'u32[144,128]{1,0:T(1,128)}', space=vmem, size = 0x12000, scoped, tag = 'internal scratch']
  %s0 = inlined_call_operand.hbm [shape: f32[16,128], index: 0, kind: input, shape index: {}]
  %s1 = inlined_call_operand.hbm [shape: f32[16,128], index: 1, kind: output, shape index: {}]
  %s2 = sld [smem:[#allocation0]]
  $region18: #{tpu_custom_call.1} parent=0
    _
  %s4 = ssub.s32 1, %s2
  %s5 = scalar_select 0, %s4, %s2
  $region1: #{tpu_custom_call.1} parent=0
    #allocation2 [shape = 'u8[8192]{0}', space=vmem, size = 0x2000, scoped, tag = 'input window, operand 0, single buffered']
    #allocation3 [shape = 's32[1]{0}', space=sflag, size = 0x4, scoped, tag = 'scoped memory for tpu_custom_call.1']
    #allocation4 [shape = 's32[1]{0}', space=sflag, size = 0x4, scoped, tag = 'scoped memory for tpu_custom_call.1']
    #allocation5 [shape = 'u8[8192]{0}', space=vmem, size = 0x2000, scoped, tag = 'output window, operand 0, single buffered']
    %6 = vsyncpa [#allocation3], 0
    %7 = vsyncpa [#allocation4], 0
    // Predicated region
    $region2: #{tpu_custom_call.1} parent=1 // pred_check
      _
    $region3: #{tpu_custom_call.1} parent=1 // pred_check_branch
      %9 = sbr.rel (0) target = $region5
    $region4: #{tpu_custom_call.1} parent=1 // pred_region
      %s11 = ssub.s32 256, 256
      %12 = vsyncadd [#allocation3], %s11
      %s13 = sshll.u32 [#allocation2], 4
      %s14 = int_to_ptr.vmem [resolvable:$true] %s13
      %19 = dma.hbm_to_vmem [thread:$0]  %s0, 256, %s14, [#allocation3], 128, 128, 8
    $region5: #{tpu_custom_call.1} parent=1 // pred_fallthru
      _
    // Predicated region
    $region6: #{tpu_custom_call.1} parent=1 // pred_check
      _
    $region7: #{tpu_custom_call.1} parent=1 // pred_check_branch
      %21 = sbr.rel (0) target = $region9
    $region8: #{tpu_custom_call.1} parent=1 // pred_region
      %22 = dma.done [#allocation3], 256
    $region9: #{tpu_custom_call.1} parent=1 // pred_fallthru
      _
    %v23 = vld [vmem:[#allocation2] sm:$0xff]
    %v24 = vld [vmem:[#allocation2 + $0x8] sm:$0xff]
    %v25 = vmax.f32 %v23, 0.0
    %v26 = vmax.f32 %v24, 0.0
    %27 = vst [vmem:[#allocation5] sm:$0xff] %v25
    %28 = vst [vmem:[#allocation5 + $0x8] sm:$0xff] %v26
    // Predicated region
    $region10: #{tpu_custom_call.1} parent=1 // pred_check
      _
    $region11: #{tpu_custom_call.1} parent=1 // pred_check_branch
      %30 = sbr.rel (0) target = $region13
    $region12: #{tpu_custom_call.1} parent=1 // pred_region
      %s32 = ssub.s32 256, 256
      %33 = vsyncadd [#allocation4], %s32
      %s34 = sshll.u32 [#allocation5], 4
      %s35 = int_to_ptr.vmem [resolvable:$true] %s34
      %40 = dma.vmem_to_hbm [thread:$0]  %s35, 256, %s1, [#allocation4], 128, 128, 8
    $region13: #{tpu_custom_call.1} parent=1 // pred_fallthru
      _
    // Predicated region
    $region14: #{tpu_custom_call.1} parent=1 // pred_check
      _
    $region15: #{tpu_custom_call.1} parent=1 // pred_check_branch
      %42 = sbr.rel (0) target = $region17
    $region16: #{tpu_custom_call.1} parent=1 // pred_region
      %43 = dma.done [#allocation4], 256
    $region17: #{tpu_custom_call.1} parent=1 // pred_fallthru
      _
    %44 = vsyncpa [#allocation3], 1
    %45 = vsyncpa [#allocation4], 1

</llo_original>
